<compile_context>
chip_gen: v7x
topology: tpu7x:2x2x1
jax: 0.10.0
libtpu: 0.0.40
codegen_flags: <defaults>
</compile_context>

<pallas_src>
import jax
import jax.numpy as jnp
from jax.experimental import pallas as pl
from jax.experimental.pallas import tpu as pltpu


# --------------------------------------------------------------------------
# Single-timestep kernel (exactly the PyTorch module's forward()).
# --------------------------------------------------------------------------
def rnn_ppo_step_kernel(xh_ref, c_ref, w_g_ref, b_g_ref, w_h_ref, b_h_ref,
                        heads_ref, state_ref):
    H = c_ref.shape[-1]

    # gates = [x|h] @ [W_ih^T ; W_hh^T] + (b_ih + b_hh)   -- one MXU matmul
    gates = (jnp.dot(xh_ref[...], w_g_ref[...],
                     preferred_element_type=jnp.float32) + b_g_ref[...])

    i_g = jax.nn.sigmoid(gates[:, 0 * H:1 * H])
    f_g = jax.nn.sigmoid(gates[:, 1 * H:2 * H])
    g_g = jnp.tanh(gates[:, 2 * H:3 * H])
    o_g = jax.nn.sigmoid(gates[:, 3 * H:4 * H])

    c_new = f_g * c_ref[...] + i_g * g_g
    h_new = o_g * jnp.tanh(c_new)

    state_ref[0] = h_new.astype(state_ref.dtype)
    state_ref[1] = c_new.astype(state_ref.dtype)

    # Fused policy+value head: one matmul, one lane-dense (B, P+V) ReLU output.
    heads = (jnp.dot(h_new, w_h_ref[...],
                     preferred_element_type=jnp.float32) + b_h_ref[...])
    heads_ref[...] = jnp.maximum(heads, 0.0).astype(heads_ref.dtype)


def rnn_ppo_forward(features, rnn_states, params, *, latent_dim_pi):
    """Single timestep, matching RNN_PPO_Network.forward.
    features: (B, F); rnn_states: (h, c) each (B, H).
    Returns (latent_pi, latent_vf, (h_new, c_new))."""
    h0, c0 = rnn_states
    w_g, b_g, w_h, b_h = params
    B, _ = features.shape
    H = h0.shape[-1]
    PV = w_h.shape[-1]

    # Host-side concat so the kernel does a single gate matmul.
    xh = jnp.concatenate([features, h0], axis=-1)          # (B, F+H)

    vmem = pl.BlockSpec(memory_space=pltpu.MemorySpace.VMEM)

    heads, state = pl.pallas_call(
        rnn_ppo_step_kernel,
        out_shape=(
            jax.ShapeDtypeStruct((B, PV), jnp.float32),     # [pi | vf]
            jax.ShapeDtypeStruct((2, B, H), jnp.float32),   # [h_new ; c_new]
        ),
        in_specs=[vmem] * 6,
        out_specs=(vmem, vmem),
    )(xh, c0, w_g, b_g, w_h, b_h)

    latent_pi = heads[:, :latent_dim_pi]
    latent_vf = heads[:, latent_dim_pi:]
    return latent_pi, latent_vf, (state[0], state[1])


# --------------------------------------------------------------------------
# Fused T-step rollout kernel: grid=(T,), (h, c) resident in VMEM scratch.
# --------------------------------------------------------------------------
def rnn_ppo_rollout_kernel(x_ref, state0_ref, w_g_ref, b_g_ref, w_h_ref, b_h_ref,
                           heads_ref, state_out_ref, state_scr):
    t = pl.program_id(0)
    F = x_ref.shape[-1]
    H = state_scr.shape[-1]

    @pl.when(t == 0)
    def _init():
        state_scr[...] = state0_ref[...]

    x = x_ref[0]                 # (B, F) current timestep
    h = state_scr[0]             # (B, H)
    c = state_scr[1]             # (B, H)

    # Single resident stacked weight; static sublane slices -> two MXU matmuls
    # (avoids an in-kernel lane-shuffle concat of [x|h] every step).
    gates = (jnp.dot(x, w_g_ref[:F, :], preferred_element_type=jnp.float32)
             + jnp.dot(h, w_g_ref[F:, :], preferred_element_type=jnp.float32)
             + b_g_ref[...])

    i_g = jax.nn.sigmoid(gates[:, 0 * H:1 * H])
    f_g = jax.nn.sigmoid(gates[:, 1 * H:2 * H])
    g_g = jnp.tanh(gates[:, 2 * H:3 * H])
    o_g = jax.nn.sigmoid(gates[:, 3 * H:4 * H])

    c_new = f_g * c + i_g * g_g
    h_new = o_g * jnp.tanh(c_new)

    # State stays in VMEM across grid steps -- no HBM round trip per timestep.
    state_scr[0] = h_new
    state_scr[1] = c_new

    # Lane-dense (B, P+V) per-step activation output.
    heads = (jnp.dot(h_new, w_h_ref[...], preferred_element_type=jnp.float32)
             + b_h_ref[...])
    heads_ref[0] = jnp.maximum(heads, 0.0).astype(heads_ref.dtype)

    @pl.when(t == pl.num_programs(0) - 1)
    def _finalize():
        state_out_ref[...] = state_scr[...].astype(state_out_ref.dtype)


def rnn_ppo_rollout(features_seq, rnn_states, params, *, latent_dim_pi):
    """Applies the module forward T times inside one kernel.
    features_seq: (T, B, F). Returns per-step (latent_pi, latent_vf) of shape
    (T, B, P)/(T, B, V) and the final (h, c)."""
    h0, c0 = rnn_states
    w_g, b_g, w_h, b_h = params
    T, B, F = features_seq.shape
    H = h0.shape[-1]
    FH, G4 = w_g.shape
    PV = w_h.shape[-1]

    state0 = jnp.stack([h0, c0], axis=0)                    # (2, B, H)

    heads_seq, state = pl.pallas_call(
        rnn_ppo_rollout_kernel,
        out_shape=(
            jax.ShapeDtypeStruct((T, B, PV), jnp.float32),
            jax.ShapeDtypeStruct((2, B, H), jnp.float32),
        ),
        grid=(T,),
        in_specs=[
            pl.BlockSpec((1, B, F), lambda t: (t, 0, 0)),    # stream features[t]
            pl.BlockSpec((2, B, H), lambda t: (0, 0, 0)),    # initial state (resident)
            pl.BlockSpec((FH, G4), lambda t: (0, 0)),        # gate weight, DMA'd once
            pl.BlockSpec((1, G4), lambda t: (0, 0)),         # fused gate bias
            pl.BlockSpec((H, PV), lambda t: (0, 0)),         # fused head weight
            pl.BlockSpec((1, PV), lambda t: (0, 0)),         # fused head bias
        ],
        out_specs=(
            pl.BlockSpec((1, B, PV), lambda t: (t, 0, 0)),   # per-step latents
            pl.BlockSpec((2, B, H), lambda t: (0, 0, 0)),    # final state (written once)
        ),
        scratch_shapes=[pltpu.VMEM((2, B, H), jnp.float32)],
        compiler_params=pltpu.CompilerParams(
            dimension_semantics=("arbitrary",)),             # recurrence: sequential
    )(features_seq, state0, w_g, b_g, w_h, b_h)

    latent_pi = heads_seq[..., :latent_dim_pi]
    latent_vf = heads_seq[..., latent_dim_pi:]
    return latent_pi, latent_vf, (state[0], state[1])


# --------------------------------------------------------------------------
# Parameter init (PyTorch default layouts/ranges) + host-side packing.
# --------------------------------------------------------------------------
def init_torch_params(key, feature_dim, hidden, pi_dim, vf_dim):
    """torch layouts: LSTMCell W_ih (4H,F), W_hh (4H,H), b_* (4H,), all
    U(-1/sqrt(H), 1/sqrt(H)); Linear W (out,in), b (out,), U(-1/sqrt(in),...)."""
    ks = jax.random.split(key, 8)
    k_lstm = 1.0 / jnp.sqrt(jnp.float32(hidden))
    k_lin = 1.0 / jnp.sqrt(jnp.float32(hidden))

    def u(k, shape, scale):
        return jax.random.uniform(k, shape, jnp.float32, -scale, scale)

    return dict(
        w_ih=u(ks[0], (4 * hidden, feature_dim), k_lstm),
        w_hh=u(ks[1], (4 * hidden, hidden), k_lstm),
        b_ih=u(ks[2], (4 * hidden,), k_lstm),
        b_hh=u(ks[3], (4 * hidden,), k_lstm),
        w_pi=u(ks[4], (pi_dim, hidden), k_lin),
        b_pi=u(ks[5], (pi_dim,), k_lin),
        w_vf=u(ks[6], (vf_dim, hidden), k_lin),
        b_vf=u(ks[7], (vf_dim,), k_lin),
    )


def pack_params(tp):
    """Fuse torch-layout params into the kernel layout."""
    w_gates = jnp.concatenate([tp["w_ih"].T, tp["w_hh"].T], axis=0)      # (F+H, 4H)
    b_gates = (tp["b_ih"] + tp["b_hh"]).reshape(1, -1)                   # (1, 4H)
    w_heads = jnp.concatenate([tp["w_pi"].T, tp["w_vf"].T], axis=1)      # (H, P+V)
    b_heads = jnp.concatenate([tp["b_pi"], tp["b_vf"]]).reshape(1, -1)   # (1, P+V)
    return w_gates, b_gates, w_heads, b_heads


def ref_forward(x, h, c, tp):
    """Pure-JAX reference identical to torch.nn.LSTMCell + Linear+ReLU heads."""
    H = h.shape[-1]
    gates = x @ tp["w_ih"].T + tp["b_ih"] + h @ tp["w_hh"].T + tp["b_hh"]
    i = jax.nn.sigmoid(gates[:, 0 * H:1 * H])
    f = jax.nn.sigmoid(gates[:, 1 * H:2 * H])
    g = jnp.tanh(gates[:, 2 * H:3 * H])
    o = jax.nn.sigmoid(gates[:, 3 * H:4 * H])
    c_new = f * c + i * g
    h_new = o * jnp.tanh(c_new)
    pi = jnp.maximum(h_new @ tp["w_pi"].T + tp["b_pi"], 0.0)
    vf = jnp.maximum(h_new @ tp["w_vf"].T + tp["b_vf"], 0.0)
    return pi, vf, (h_new, c_new)


if __name__ == "__main__":
    B = 8
    FEATURE_DIM = 32
    HIDDEN = 64       # rnn_hidden_size
    PI_DIM = 64       # last_layer_dim_pi
    VF_DIM = 64       # last_layer_dim_vf
    T = 16            # rollout length for the fused-time-loop kernel

    key = jax.random.PRNGKey(0)
    k_x, k_h, k_c, k_p = jax.random.split(key, 4)

    feats_seq = jax.random.normal(k_x, (T, B, FEATURE_DIM), jnp.float32)
    h0 = jax.random.normal(k_h, (B, HIDDEN), jnp.float32)
    c0 = jax.random.normal(k_c, (B, HIDDEN), jnp.float32)

    tp = init_torch_params(k_p, FEATURE_DIM, HIDDEN, PI_DIM, VF_DIM)
    params = pack_params(tp)

    # ---- single-step (the module's forward) ----
    pi1, vf1, (h1, c1) = rnn_ppo_forward(feats_seq[0], (h0, c0), params,
                                         latent_dim_pi=PI_DIM)
    jax.block_until_ready((pi1, vf1, h1, c1))
    assert pi1.shape == (B, PI_DIM) and vf1.shape == (B, VF_DIM)
    assert h1.shape == (B, HIDDEN) and c1.shape == (B, HIDDEN)

    pi_r, vf_r, (h_r, c_r) = ref_forward(feats_seq[0], h0, c0, tp)
    for got, want in ((pi1, pi_r), (vf1, vf_r), (h1, h_r), (c1, c_r)):
        assert jnp.allclose(got, want, rtol=1e-3, atol=1e-3), "single-step mismatch"

    # ---- fused T-step rollout ----
    pis, vfs, (hT, cT) = rnn_ppo_rollout(feats_seq, (h0, c0), params,
                                         latent_dim_pi=PI_DIM)
    jax.block_until_ready((pis, vfs, hT, cT))
    assert pis.shape == (T, B, PI_DIM) and vfs.shape == (T, B, VF_DIM)
    assert hT.shape == (B, HIDDEN) and cT.shape == (B, HIDDEN)

    # reference rollout (pure JAX, step by step)
    h, c = h0, c0
    ref_pis, ref_vfs = [], []
    for t in range(T):
        p, v, (h, c) = ref_forward(feats_seq[t], h, c, tp)
        ref_pis.append(p)
        ref_vfs.append(v)
    ref_pis = jnp.stack(ref_pis)
    ref_vfs = jnp.stack(ref_vfs)

    assert jnp.allclose(pis, ref_pis, rtol=1e-3, atol=1e-3), "rollout pi mismatch"
    assert jnp.allclose(vfs, ref_vfs, rtol=1e-3, atol=1e-3), "rollout vf mismatch"
    assert jnp.allclose(hT, h, rtol=1e-3, atol=1e-3), "rollout h mismatch"
    assert jnp.allclose(cT, c, rtol=1e-3, atol=1e-3), "rollout c mismatch"

    print("KERNEL_OK")
</pallas_src>

<mosaic_0001>
module attributes {stable_mosaic.version = 11 : i64} {
  func.func @rnn_ppo_step_kernel(%arg0: memref<8x96xf32, #tpu.memory_space<vmem>>, %arg1: memref<8x64xf32, #tpu.memory_space<vmem>>, %arg2: memref<96x256xf32, #tpu.memory_space<vmem>>, %arg3: memref<1x256xf32, #tpu.memory_space<vmem>>, %arg4: memref<64x128xf32, #tpu.memory_space<vmem>>, %arg5: memref<1x128xf32, #tpu.memory_space<vmem>>, %arg6: memref<8x128xf32, #tpu.memory_space<vmem>>, %arg7: memref<2x8x64xf32, #tpu.memory_space<vmem>>) attributes {dimension_semantics = [], scalar_prefetch = 0 : i64, scratch_operands = 0 : i64, tpu.core_type = #tpu.core_type<tc>} {
    %c0 = arith.constant 0 : index
    %c0_0 = arith.constant 0 : index
    %0 = vector.load %arg0[%c0, %c0_0] : memref<8x96xf32, #tpu.memory_space<vmem>>, vector<8x96xf32>
    %c0_1 = arith.constant 0 : index
    %c0_2 = arith.constant 0 : index
    %1 = vector.load %arg2[%c0_1, %c0_2] : memref<96x256xf32, #tpu.memory_space<vmem>>, vector<96x256xf32>
    %cst = arith.constant dense<0.000000e+00> : vector<8x256xf32>
    %2 = tpu.matmul %0, %1, %cst {dimension_numbers = #tpu.dot_dimension_numbers<[1], [0], [0], [1], [0, 0, 1, 1], [], []>} : vector<8x96xf32>, vector<96x256xf32>, vector<8x256xf32> -> vector<8x256xf32>
    %c0_3 = arith.constant 0 : index
    %c0_4 = arith.constant 0 : index
    %3 = vector.load %arg3[%c0_3, %c0_4] : memref<1x256xf32, #tpu.memory_space<vmem>>, vector<1x256xf32>
    %4 = vector.broadcast %3 : vector<1x256xf32> to vector<8x256xf32>
    %5 = arith.addf %2, %4 : vector<8x256xf32>
    %6 = vector.extract_strided_slice %5 {offsets = [0, 0], sizes = [8, 64], strides = [1, 1]} : vector<8x256xf32> to vector<8x64xf32>
    %7 = arith.negf %6 : vector<8x64xf32>
    %8 = math.exp %7 : vector<8x64xf32>
    %cst_5 = arith.constant 1.000000e+00 : f32
    %9 = vector.broadcast %cst_5 : f32 to vector<8x64xf32>
    %10 = arith.addf %9, %8 : vector<8x64xf32>
    %11 = arith.divf %9, %10 : vector<8x64xf32>
    %12 = vector.extract_strided_slice %5 {offsets = [0, 64], sizes = [8, 64], strides = [1, 1]} : vector<8x256xf32> to vector<8x64xf32>
    %13 = arith.negf %12 : vector<8x64xf32>
    %14 = math.exp %13 : vector<8x64xf32>
    %cst_6 = arith.constant 1.000000e+00 : f32
    %15 = vector.broadcast %cst_6 : f32 to vector<8x64xf32>
    %16 = arith.addf %15, %14 : vector<8x64xf32>
    %17 = arith.divf %15, %16 : vector<8x64xf32>
    %18 = vector.extract_strided_slice %5 {offsets = [0, 128], sizes = [8, 64], strides = [1, 1]} : vector<8x256xf32> to vector<8x64xf32>
    %19 = math.tanh %18 : vector<8x64xf32>
    %20 = vector.extract_strided_slice %5 {offsets = [0, 192], sizes = [8, 64], strides = [1, 1]} : vector<8x256xf32> to vector<8x64xf32>
    %21 = arith.negf %20 : vector<8x64xf32>
    %22 = math.exp %21 : vector<8x64xf32>
    %cst_7 = arith.constant 1.000000e+00 : f32
    %23 = vector.broadcast %cst_7 : f32 to vector<8x64xf32>
    %24 = arith.addf %23, %22 : vector<8x64xf32>
    %25 = arith.divf %23, %24 : vector<8x64xf32>
    %c0_8 = arith.constant 0 : index
    %c0_9 = arith.constant 0 : index
    %26 = vector.load %arg1[%c0_8, %c0_9] : memref<8x64xf32, #tpu.memory_space<vmem>>, vector<8x64xf32>
    %27 = arith.mulf %17, %26 : vector<8x64xf32>
    %28 = arith.mulf %11, %19 : vector<8x64xf32>
    %29 = arith.addf %27, %28 : vector<8x64xf32>
    %30 = math.tanh %29 : vector<8x64xf32>
    %31 = arith.mulf %25, %30 : vector<8x64xf32>
    %c0_10 = arith.constant 0 : index
    %c0_11 = arith.constant 0 : index
    %c0_12 = arith.constant 0 : index
    %32 = vector.load %arg7[%c0_10, %c0_11, %c0_12] : memref<2x8x64xf32, #tpu.memory_space<vmem>>, vector<1x8x64xf32>
    %33 = vector.shape_cast %32 : vector<1x8x64xf32> to vector<8x64xf32>
    %34 = vector.shape_cast %31 : vector<8x64xf32> to vector<1x8x64xf32>
    tpu.vector_store %arg7[%c0_10, %c0_11, %c0_12], %34 {strides = array<i32>} : memref<2x8x64xf32, #tpu.memory_space<vmem>>, vector<1x8x64xf32>,
    %c1 = arith.constant 1 : index
    %c0_13 = arith.constant 0 : index
    %c0_14 = arith.constant 0 : index
    %35 = vector.load %arg7[%c1, %c0_13, %c0_14] : memref<2x8x64xf32, #tpu.memory_space<vmem>>, vector<1x8x64xf32>
    %36 = vector.shape_cast %35 : vector<1x8x64xf32> to vector<8x64xf32>
    %37 = vector.shape_cast %29 : vector<8x64xf32> to vector<1x8x64xf32>
    tpu.vector_store %arg7[%c1, %c0_13, %c0_14], %37 {strides = array<i32>} : memref<2x8x64xf32, #tpu.memory_space<vmem>>, vector<1x8x64xf32>,
    %c0_15 = arith.constant 0 : index
    %c0_16 = arith.constant 0 : index
    %38 = vector.load %arg4[%c0_15, %c0_16] : memref<64x128xf32, #tpu.memory_space<vmem>>, vector<64x128xf32>
    %cst_17 = arith.constant dense<0.000000e+00> : vector<8x128xf32>
    %39 = tpu.matmul %31, %38, %cst_17 {dimension_numbers = #tpu.dot_dimension_numbers<[1], [0], [0], [1], [0, 0, 1, 1], [], []>} : vector<8x64xf32>, vector<64x128xf32>, vector<8x128xf32> -> vector<8x128xf32>
    %c0_18 = arith.constant 0 : index
    %c0_19 = arith.constant 0 : index
    %40 = vector.load %arg5[%c0_18, %c0_19] : memref<1x128xf32, #tpu.memory_space<vmem>>, vector<1x128xf32>
    %41 = vector.broadcast %40 : vector<1x128xf32> to vector<8x128xf32>
    %42 = arith.addf %39, %41 : vector<8x128xf32>
    %cst_20 = arith.constant 0.000000e+00 : f32
    %43 = vector.broadcast %cst_20 : f32 to vector<8x128xf32>
    %44 = arith.maximumf %42, %43 : vector<8x128xf32>
    %c0_21 = arith.constant 0 : index
    %c0_22 = arith.constant 0 : index
    %45 = vector.load %arg6[%c0_21, %c0_22] : memref<8x128xf32, #tpu.memory_space<vmem>>, vector<8x128xf32>
    tpu.vector_store %arg6[%c0_21, %c0_22], %44 {strides = array<i32>} : memref<8x128xf32, #tpu.memory_space<vmem>>, vector<8x128xf32>,
    return
  }
}

</mosaic_0001>

<llo_original>
// kernel: tpu_custom_call.1
$region0: #{tpu_custom_call.1}
  #allocation0 [shape = 'u32[]', space=smem, size = 0x4, offset = 0x4, fixed_abs, tag = 'smem constant byte address 0x4 - core index']
  #allocation1 [shape = 'u32[144,128]{1,0:T(1,128)}', space=vmem, size = 0x12000, scoped, tag = 'internal scratch']
  %s0 = inlined_call_operand.hbm [shape: f32[8,96], index: 0, kind: input, shape index: {}]
  %s1 = inlined_call_operand.hbm [shape: f32[8,64], index: 1, kind: input, shape index: {}]
  %s2 = inlined_call_operand.hbm [shape: f32[96,256], index: 2, kind: input, shape index: {}]
  %s3 = inlined_call_operand.vmem [shape: f32[1,256], index: 3, kind: input, shape index: {}]
  %s4 = inlined_call_operand.hbm [shape: f32[64,128], index: 4, kind: input, shape index: {}]
  %s5 = inlined_call_operand.vmem [shape: f32[1,128], index: 5, kind: input, shape index: {}]
  %s6 = inlined_call_operand.hbm [shape: f32[8,128], index: 6, kind: output, shape index: {0}]
  %s7 = inlined_call_operand.hbm [shape: f32[2,8,64], index: 7, kind: output, shape index: {1}]
  %8 = xla_tuple %s6, %s7
  %s9 = sld [smem:[#allocation0]]
  $region58: #{tpu_custom_call.1} parent=0
    _
  %s11 = ssub.s32 1, %s9
  %s12 = scalar_select 0, %s11, %s9
  $region1: #{tpu_custom_call.1} parent=0
    #allocation2 [shape = 'u8[4096]{0}', space=vmem, size = 0x1000, scoped, tag = 'input window, operand 0, single buffered']
    #allocation3 [shape = 's32[1]{0}', space=sflag, size = 0x4, scoped, tag = 'scoped memory for tpu_custom_call.1']
    #allocation4 [shape = 's32[1]{0}', space=sflag, size = 0x4, scoped, tag = 'scoped memory for tpu_custom_call.1']
    #allocation5 [shape = 'u8[4096]{0}', space=vmem, size = 0x1000, scoped, tag = 'input window, operand 1, single buffered']
    #allocation6 [shape = 's32[1]{0}', space=sflag, size = 0x4, scoped, tag = 'scoped memory for tpu_custom_call.1']
    #allocation7 [shape = 'u8[98304]{0}', space=vmem, size = 0x18000, scoped, tag = 'input window, operand 2, single buffered']
    #allocation8 [shape = 'u8[32768]{0}', space=vmem, size = 0x8000, scoped, tag = 'input window, operand 4, single buffered']
    #allocation9 [shape = 's32[1]{0}', space=sflag, size = 0x4, scoped, tag = 'scoped memory for tpu_custom_call.1']
    #allocation10 [shape = 'u8[4096]{0}', space=vmem, size = 0x1000, scoped, tag = 'output window, operand 0, single buffered']
    #allocation11 [shape = 'u8[8192]{0}', space=vmem, size = 0x2000, scoped, tag = 'output window, operand 1, single buffered']
    #allocation12 [shape = 's32[1]{0}', space=sflag, size = 0x4, scoped, tag = 'scoped memory for tpu_custom_call.1']
    %13 = vsyncpa [#allocation3], 0
    %14 = vsyncpa [#allocation6], 0
    %15 = vsyncpa [#allocation9], 0
    %16 = vsyncpa [#allocation4], 0
    %17 = vsyncpa [#allocation12], 0
    // Predicated region
    $region2: #{tpu_custom_call.1} parent=1 // pred_check
      _
    $region3: #{tpu_custom_call.1} parent=1 // pred_check_branch
      %19 = sbr.rel (0) target = $region5
    $region4: #{tpu_custom_call.1} parent=1 // pred_region
      %s21 = ssub.s32 128, 128
      %22 = vsyncadd [#allocation3], %s21
      %s24 = sshll.u32 [#allocation2], 4
      %s25 = int_to_ptr.vmem [resolvable:$true] %s24
      %27 = dma.hbm_to_vmem [thread:$0]  %s0, 128, %s25, [#allocation3]
    $region5: #{tpu_custom_call.1} parent=1 // pred_fallthru
      _
    // Predicated region
    $region6: #{tpu_custom_call.1} parent=1 // pred_check
      _
    $region7: #{tpu_custom_call.1} parent=1 // pred_check_branch
      %29 = sbr.rel (0) target = $region9
    $region8: #{tpu_custom_call.1} parent=1 // pred_region
      %s31 = ssub.s32 128, 128
      %32 = vsyncadd [#allocation6], %s31
      %s34 = sshll.u32 [#allocation5], 4
      %s35 = int_to_ptr.vmem [resolvable:$true] %s34
      %37 = dma.hbm_to_vmem [thread:$0]  %s1, 128, %s35, [#allocation6]
    $region9: #{tpu_custom_call.1} parent=1 // pred_fallthru
      _
    // Predicated region
    $region10: #{tpu_custom_call.1} parent=1 // pred_check
      _
    $region11: #{tpu_custom_call.1} parent=1 // pred_check_branch
      %39 = sbr.rel (0) target = $region13
    $region12: #{tpu_custom_call.1} parent=1 // pred_region
      %s41 = ssub.s32 3072, 3072
      %42 = vsyncadd [#allocation6], %s41
      %s43 = sshll.u32 [#allocation7], 4
      %s44 = int_to_ptr.vmem [resolvable:$true] %s43
      %49 = dma.hbm_to_vmem [thread:$0]  %s2, 3072, %s44, [#allocation6], 256, 256, 16
    $region13: #{tpu_custom_call.1} parent=1 // pred_fallthru
      _
    // Predicated region
    $region14: #{tpu_custom_call.1} parent=1 // pred_check
      _
    $region15: #{tpu_custom_call.1} parent=1 // pred_check_branch
      %51 = sbr.rel (0) target = $region17
    $region16: #{tpu_custom_call.1} parent=1 // pred_region
      _
    $region17: #{tpu_custom_call.1} parent=1 // pred_fallthru
      _
    // Predicated region
    $region18: #{tpu_custom_call.1} parent=1 // pred_check
      _
    $region19: #{tpu_custom_call.1} parent=1 // pred_check_branch
      %53 = sbr.rel (0) target = $region21
    $region20: #{tpu_custom_call.1} parent=1 // pred_region
      %s55 = ssub.s32 1024, 1024
      %56 = vsyncadd [#allocation9], %s55
      %s57 = sshll.u32 [#allocation8], 4
      %s58 = int_to_ptr.vmem [resolvable:$true] %s57
      %63 = dma.hbm_to_vmem [thread:$0]  %s4, 1024, %s58, [#allocation9], 128, 128, 8
    $region21: #{tpu_custom_call.1} parent=1 // pred_fallthru
      _
    // Predicated region
    $region22: #{tpu_custom_call.1} parent=1 // pred_check
      _
    $region23: #{tpu_custom_call.1} parent=1 // pred_check_branch
      %65 = sbr.rel (0) target = $region25
    $region24: #{tpu_custom_call.1} parent=1 // pred_region
      _
    $region25: #{tpu_custom_call.1} parent=1 // pred_fallthru
      _
    // Predicated region
    $region26: #{tpu_custom_call.1} parent=1 // pred_check
      _
    $region27: #{tpu_custom_call.1} parent=1 // pred_check_branch
      %67 = sbr.rel (0) target = $region29
    $region28: #{tpu_custom_call.1} parent=1 // pred_region
      %68 = dma.done [#allocation3], 128
    $region29: #{tpu_custom_call.1} parent=1 // pred_fallthru
      _
    // Predicated region
    $region30: #{tpu_custom_call.1} parent=1 // pred_check
      _
    $region31: #{tpu_custom_call.1} parent=1 // pred_check_branch
      %70 = sbr.rel (0) target = $region33
    $region32: #{tpu_custom_call.1} parent=1 // pred_region
      %71 = dma.done [#allocation6], 128
    $region33: #{tpu_custom_call.1} parent=1 // pred_fallthru
      _
    // Predicated region
    $region34: #{tpu_custom_call.1} parent=1 // pred_check
      _
    $region35: #{tpu_custom_call.1} parent=1 // pred_check_branch
      %73 = sbr.rel (0) target = $region37
    $region36: #{tpu_custom_call.1} parent=1 // pred_region
      %74 = dma.done [#allocation6], 3072
    $region37: #{tpu_custom_call.1} parent=1 // pred_fallthru
      _
    // Predicated region
    $region38: #{tpu_custom_call.1} parent=1 // pred_check
      _
    $region39: #{tpu_custom_call.1} parent=1 // pred_check_branch
      %76 = sbr.rel (0) target = $region41
    $region40: #{tpu_custom_call.1} parent=1 // pred_region
      %77 = dma.done [#allocation9], 1024
    $region41: #{tpu_custom_call.1} parent=1 // pred_fallthru
      _
    %v78 = vld [vmem:[#allocation2] sm:$0xff]
    %v79 = vld [vmem:[#allocation7] sm:$0xff]
    %v80 = vld [vmem:[#allocation7 + $0x8] sm:$0xff]
    %v81 = vld [vmem:[#allocation7 + $0x10] sm:$0xff]
    %v82 = vld [vmem:[#allocation7 + $0x18] sm:$0xff]
    %v83 = vld [vmem:[#allocation7 + $0x20] sm:$0xff]
    %v84 = vld [vmem:[#allocation7 + $0x28] sm:$0xff]
    %v85 = vld [vmem:[#allocation7 + $0x30] sm:$0xff]
    %v86 = vld [vmem:[#allocation7 + $0x38] sm:$0xff]
    %v87 = vld [vmem:[#allocation7 + $0x40] sm:$0xff]
    %v88 = vld [vmem:[#allocation7 + $0x48] sm:$0xff]
    %v89 = vld [vmem:[#allocation7 + $0x50] sm:$0xff]
    %v90 = vld [vmem:[#allocation7 + $0x58] sm:$0xff]
    %v91 = vld [vmem:[#allocation7 + $0x60] sm:$0xff]
    %v92 = vld [vmem:[#allocation7 + $0x68] sm:$0xff]
    %v93 = vld [vmem:[#allocation7 + $0x70] sm:$0xff]
    %v94 = vld [vmem:[#allocation7 + $0x78] sm:$0xff]
    %v95 = vld [vmem:[#allocation7 + $0x80] sm:$0xff]
    %v96 = vld [vmem:[#allocation7 + $0x88] sm:$0xff]
    %v97 = vld [vmem:[#allocation7 + $0x90] sm:$0xff]
    %v98 = vld [vmem:[#allocation7 + $0x98] sm:$0xff]
    %v99 = vld [vmem:[#allocation7 + $0xa0] sm:$0xff]
    %v100 = vld [vmem:[#allocation7 + $0xa8] sm:$0xff]
    %v101 = vld [vmem:[#allocation7 + $0xb0] sm:$0xff]
    %v102 = vld [vmem:[#allocation7 + $0xb8] sm:$0xff]
    %v103 = vld [vmem:[%s3] sm:$0x3]
    %v105 = vlaneseq
    %v106 = vshrl.u32 %v105, 7
    %v107 = vsub.s32 0, %v106
    %v108 = vrot.slane %v103, %v107
    %v109 = vlaneseq
    %v110 = vshrl.u32 %v109, 7
    %v111 = vsub.s32 1, %v110
    %v112 = vrot.slane %v103, %v111
    %vm115 = vcmask 785408
    %v117 = vsel %vm115, %v78, 0
    %119 = vmatprep.subr.mxu0 %v80
    %120 = vmatpush1.msra.mxu0 %v79
    %121 = vmatprep.subr.mxu0 %v82
    %122 = vmatpush1.msra.mxu0 %v81
    %123 = vmatprep.subr.mxu0 %v84
    %124 = vmatpush1.msra.mxu0 %v83
    %125 = vmatprep.subr.mxu0 %v86
    %126 = vmatpush1.msra.mxu0 %v85
    %127 = vmatprep.subr.mxu0 %v88
    %128 = vmatpush1.msra.mxu0 %v87
    %129 = vmatprep.subr.mxu0 %v90
    %130 = vmatpush1.msra.mxu0 %v89
    %131 = vmatprep.subr.mxu0 %v92
    %132 = vmatpush1.msra.mxu0 %v91
    %133 = vmatprep.subr.mxu0 %v94
    %134 = vmatpush1.msra.mxu0 %v93
    %135 = vmatprep.subr.mxu0 %v96
    %136 = vmatpush1.msra.mxu0 %v95
    %137 = vmatprep.subr.mxu0 %v98
    %138 = vmatpush1.msra.mxu0 %v97
    %139 = vmatprep.subr.mxu0 %v100
    %140 = vmatpush1.msra.mxu0 %v99
    %141 = vmatprep.subr.mxu0 %v102
    %142 = vmatpush1.msra.mxu0 %v101
    %143 = vmatprep.subr.mxu0 0.0
    %144 = vmatpush1.msra.mxu0 0.0
    %145 = vmatprep.subr.mxu0 0.0
    %146 = vmatpush1.msra.mxu0 0.0
    %147 = vmatprep.subr.mxu0 0.0
    %148 = vmatpush1.msra.mxu0 0.0
    %149 = vmatprep.subr.mxu0 0.0
    %150 = vmatpush1.msra.mxu0 0.0
    %151 = vmatprep.subr.mxu0 0.0
    %152 = vmatpush1.msra.mxu0 0.0
    %153 = vmatprep.subr.mxu0 0.0
    %154 = vmatpush1.msra.mxu0 0.0
    %155 = vmatprep.subr.mxu0 0.0
    %156 = vmatpush1.msra.mxu0 0.0
    %157 = vmatprep.subr.mxu0 0.0
    %158 = vmatpush1.msra.mxu0 0.0
    %159 = vmatprep.subr.mxu0 0.0
    %160 = vmatpush1.msra.mxu0 0.0
    %161 = vmatprep.subr.mxu0 0.0
    %162 = vmatpush1.msra.mxu0 0.0
    %163 = vmatprep.subr.mxu0 0.0
    %164 = vmatpush1.msra.mxu0 0.0
    %165 = vmatprep.subr.mxu0 0.0
    %166 = vmatpush1.msra.mxu0 0.0
    %167 = vmatprep.subr.mxu0 0.0
    %168 = vmatpush1.msra.mxu0 0.0
    %169 = vmatprep.subr.mxu0 0.0
    %170 = vmatpush1.msra.mxu0 0.0
    %171 = vmatprep.subr.mxu0 0.0
    %172 = vmatpush1.msra.mxu0 0.0
    %173 = vmatprep.subr.mxu0 0.0
    %174 = vmatpush1.msra.mxu0 0.0
    %175 = vmatprep.subr.mxu0 0.0
    %176 = vmatpush1.msra.mxu0 0.0
    %177 = vmatprep.subr.mxu0 0.0
    %178 = vmatpush1.msra.mxu0 0.0
    %179 = vmatprep.subr.mxu0 0.0
    %180 = vmatpush1.msra.mxu0 0.0
    %181 = vmatprep.subr.mxu0 0.0
    %182 = vmatpush1.msra.mxu0 0.0
    %183 = vmatprep.mubr.f32.mxu0 0.0
    %184 = vmatmul.mubr.f32.gmra.mrb[0].mxu0 %v117
    %v185 = vpop.f32.mrb[0].mxu0
    %v186 = vadd.f32 %v108, %v185
    %v187 = vpop.f32.mrb[0].mxu0
    %v188 = vadd.f32 %v112, %v187
    %189 = vdwg.mxu0
    %v190 = vxor.u32 %v186, 2147483648
    %v191 = vmul.f32 %v190, 1.442695
    %v192 = vpow.pop %v191
    %v193 = vadd.f32 %v192, 1.0
    %v194 = vrcp.pop %v193
    %v195 = vmul.f32 1.0, %v194
    %v196 = vtanh.pop %v188
    %v197 = vxor.u32 %v188, 2147483648
    %v198 = vmul.f32 %v197, 1.442695
    %v199 = vpow.pop %v198
    %v200 = vadd.f32 %v199, 1.0
    %v201 = vrcp.pop %v200
    %v202 = vmul.f32 1.0, %v201
    %v203 = vld [vmem:[#allocation5] sm:$0xff]
    %205 = vrot.lane.b32.xlu0 %v203, 64
    %v206 = vpop.permute.xlu0 %205
    %v208 = vmul.f32 %v195, %v206
    %v209 = vmul.f32 %v195, %v196
    %211 = vrot.lane.b32.xlu0 %v209, 64
    %v212 = vpop.permute.xlu0 %211
    %v214 = vadd.f32 %v208, %v212
    %v215 = vtanh.pop %v214
    %v216 = vmul.f32 %v202, %v215
    %218 = vrot.lane.b32.xlu0 %v216, 64
    %v219 = vpop.permute.xlu0 %218
    %vm221 = vcmask 523264
    %222 = vst.msk [vmem:[#allocation11] sm:$0xff] %vm221, %v219
    %224 = vrot.lane.b32.xlu0 %v214, 64
    %v225 = vpop.permute.xlu0 %224
    %s227 = scalar_lea.vmem [#allocation11], 8
    %228 = vst.msk [vmem:[%s227] sm:$0xff] %vm221, %v225
    %v229 = vld [vmem:[#allocation8] sm:$0xff]
    %v230 = vld [vmem:[#allocation8 + $0x8] sm:$0xff]
    %v231 = vld [vmem:[#allocation8 + $0x10] sm:$0xff]
    %v232 = vld [vmem:[#allocation8 + $0x18] sm:$0xff]
    %v233 = vld [vmem:[#allocation8 + $0x20] sm:$0xff]
    %v234 = vld [vmem:[#allocation8 + $0x28] sm:$0xff]
    %v235 = vld [vmem:[#allocation8 + $0x30] sm:$0xff]
    %v236 = vld [vmem:[#allocation8 + $0x38] sm:$0xff]
    %v237 = vld [vmem:[%s5] sm:$0x1]
    %v239 = vlaneseq
    %v240 = vshrl.u32 %v239, 7
    %v241 = vsub.s32 0, %v240
    %v242 = vrot.slane %v237, %v241
    %v244 = vsel %vm221, %v219, 0
    %246 = vmatprep.subr.mxu0 0.0
    %247 = vmatpush1.msra.mxu0 %v229
    %248 = vmatprep.subr.mxu0 0.0
    %249 = vmatpush1.msra.mxu0 %v230
    %250 = vmatprep.subr.mxu0 0.0
    %251 = vmatpush1.msra.mxu0 %v231
    %252 = vmatprep.subr.mxu0 0.0
    %253 = vmatpush1.msra.mxu0 %v232
    %254 = vmatprep.subr.mxu0 0.0
    %255 = vmatpush1.msra.mxu0 %v233
    %256 = vmatprep.subr.mxu0 0.0
    %257 = vmatpush1.msra.mxu0 %v234
    %258 = vmatprep.subr.mxu0 0.0
    %259 = vmatpush1.msra.mxu0 %v235
    %260 = vmatprep.subr.mxu0 0.0
    %261 = vmatpush1.msra.mxu0 %v236
    %262 = vmatprep.subr.mxu0 0.0
    %263 = vmatpush1.msra.mxu0 0.0
    %264 = vmatprep.subr.mxu0 0.0
    %265 = vmatpush1.msra.mxu0 0.0
    %266 = vmatprep.subr.mxu0 0.0
    %267 = vmatpush1.msra.mxu0 0.0
    %268 = vmatprep.subr.mxu0 0.0
    %269 = vmatpush1.msra.mxu0 0.0
    %270 = vmatprep.subr.mxu0 0.0
    %271 = vmatpush1.msra.mxu0 0.0
    %272 = vmatprep.subr.mxu0 0.0
    %273 = vmatpush1.msra.mxu0 0.0
    %274 = vmatprep.subr.mxu0 0.0
    %275 = vmatpush1.msra.mxu0 0.0
    %276 = vmatprep.subr.mxu0 0.0
    %277 = vmatpush1.msra.mxu0 0.0
    %278 = vmatprep.subr.mxu0 0.0
    %279 = vmatpush1.msra.mxu0 0.0
    %280 = vmatprep.subr.mxu0 0.0
    %281 = vmatpush1.msra.mxu0 0.0
    %282 = vmatprep.subr.mxu0 0.0
    %283 = vmatpush1.msra.mxu0 0.0
    %284 = vmatprep.subr.mxu0 0.0
    %285 = vmatpush1.msra.mxu0 0.0
    %286 = vmatprep.subr.mxu0 0.0
    %287 = vmatpush1.msra.mxu0 0.0
    %288 = vmatprep.subr.mxu0 0.0
    %289 = vmatpush1.msra.mxu0 0.0
    %290 = vmatprep.subr.mxu0 0.0
    %291 = vmatpush1.msra.mxu0 0.0
    %292 = vmatprep.subr.mxu0 0.0
    %293 = vmatpush1.msra.mxu0 0.0
    %294 = vmatprep.subr.mxu0 0.0
    %295 = vmatpush1.msra.mxu0 0.0
    %296 = vmatprep.subr.mxu0 0.0
    %297 = vmatpush1.msra.mxu0 0.0
    %298 = vmatprep.subr.mxu0 0.0
    %299 = vmatpush1.msra.mxu0 0.0
    %300 = vmatprep.subr.mxu0 0.0
    %301 = vmatpush1.msra.mxu0 0.0
    %302 = vmatprep.subr.mxu0 0.0
    %303 = vmatpush1.msra.mxu0 0.0
    %304 = vmatprep.subr.mxu0 0.0
    %305 = vmatpush1.msra.mxu0 0.0
    %306 = vmatprep.subr.mxu0 0.0
    %307 = vmatpush1.msra.mxu0 0.0
    %308 = vmatprep.subr.mxu0 0.0
    %309 = vmatpush1.msra.mxu0 0.0
    %310 = vmatprep.mubr.f32.mxu0 0.0
    %311 = vmatmul.mubr.f32.gmra.mrb[0].mxu0 %v244
    %v312 = vpop.f32.mrb[0].mxu0
    %v313 = vadd.f32 %v242, %v312
    %v314 = vpop.f32.mrb[0].mxu0
    %315 = vdwg.mxu0
    %v316 = vmax.f32 %v313, 0.0
    %317 = vst [vmem:[#allocation10] sm:$0xff] %v316
    // Predicated region
    $region42: #{tpu_custom_call.1} parent=1 // pred_check
      _
    $region43: #{tpu_custom_call.1} parent=1 // pred_check_branch
      %319 = sbr.rel (0) target = $region45
    $region44: #{tpu_custom_call.1} parent=1 // pred_region
      %s321 = ssub.s32 128, 128
      %322 = vsyncadd [#allocation4], %s321
      %s324 = sshll.u32 [#allocation10], 4
      %s325 = int_to_ptr.vmem [resolvable:$true] %s324
      %327 = dma.vmem_to_hbm [thread:$0]  %s325, 128, %s6, [#allocation4]
    $region45: #{tpu_custom_call.1} parent=1 // pred_fallthru
      _
    // Predicated region
    $region46: #{tpu_custom_call.1} parent=1 // pred_check
      _
    $region47: #{tpu_custom_call.1} parent=1 // pred_check_branch
      %329 = sbr.rel (0) target = $region49
    $region48: #{tpu_custom_call.1} parent=1 // pred_region
      %s331 = ssub.s32 256, 256
      %332 = vsyncadd [#allocation12], %s331
      %s333 = sshll.u32 [#allocation11], 4
      %s334 = int_to_ptr.vmem [resolvable:$true] %s333
      %339 = dma.vmem_to_hbm [thread:$0]  %s334, 256, %s7, [#allocation12], 128, 128, 8
    $region49: #{tpu_custom_call.1} parent=1 // pred_fallthru
      _
    // Predicated region
    $region50: #{tpu_custom_call.1} parent=1 // pred_check
      _
    $region51: #{tpu_custom_call.1} parent=1 // pred_check_branch
      %341 = sbr.rel (0) target = $region53
    $region52: #{tpu_custom_call.1} parent=1 // pred_region
      %342 = dma.done [#allocation4], 128
    $region53: #{tpu_custom_call.1} parent=1 // pred_fallthru
      _
    // Predicated region
    $region54: #{tpu_custom_call.1} parent=1 // pred_check
      _
    $region55: #{tpu_custom_call.1} parent=1 // pred_check_branch
      %344 = sbr.rel (0) target = $region57
    $region56: #{tpu_custom_call.1} parent=1 // pred_region
      %345 = dma.done [#allocation12], 256
    $region57: #{tpu_custom_call.1} parent=1 // pred_fallthru
      _
    %346 = vsyncpa [#allocation3], 1
    %347 = vsyncpa [#allocation6], 1
    %348 = vsyncpa [#allocation9], 1
    %349 = vsyncpa [#allocation4], 1
    %350 = vsyncpa [#allocation12], 1

</llo_original>
